<compile_context>
chip_gen: v6e
topology: v6e:2x2x1
jax: 0.10.0
libtpu: 0.0.40
codegen_flags: <defaults>
</compile_context>

<pallas_src>
import functools

import jax
import jax.numpy as jnp
from jax.experimental import pallas as pl
from jax.experimental.pallas import tpu as pltpu


# ----------------------------------------------------------------------------
# Pallas kernel: fused Shell forward hot path (transposed / lane-dense layout)
#   feat = relu(Wb @ patches + bb)     (base conv as matmul + bias + ReLU)
#   out  = Wh @ feat + bh              (both 1x1-conv heads, fused)
# ----------------------------------------------------------------------------
def shell_kernel(p_ref, wb_ref, bb_ref, wh_ref, bh_ref, o_ref):
    # p_ref : (Kpad, TN) bf16  -- im2col patches (rows >= 9*Cin are zeros)
    # wb_ref: (C_base, Kpad) bf16
    # bb_ref: (C_base, 1) f32
    # wh_ref: (C1+C2, C_base) bf16 -- the two heads concatenated
    # bh_ref: (C1+C2, 1) f32
    # o_ref : (C1+C2, TN) f32      -- lane-dense output block
    feat = jnp.dot(wb_ref[...], p_ref[...],
                   preferred_element_type=jnp.float32)        # (C_base, TN) f32
    feat = jnp.maximum(feat + bb_ref[...], 0.0)               # bias + ReLU (f32)
    # bf16 inputs / f32 accumulation for the head matmul: one MXU pass.
    o_ref[...] = jnp.dot(wh_ref[...], feat.astype(jnp.bfloat16),
                         preferred_element_type=jnp.float32) + bh_ref[...]


def _round_up(x, m):
    return ((x + m - 1) // m) * m


def _build_patches_bf16(image_nchw, *, tile_n, k=3, stride=2):
    """Single-materialization bf16 im2col at the padded sizes.

    Returns patches of shape (B, Kpad, n_pad) bf16 with
      row order   : (ky, kx, cin) for rows < k*k*Cin, zeros above,
      column order: flat (ho, wo) per batch, garbage/zero columns >= Ho*Wo.
    """
    b, c, h, w = image_nchw.shape
    ho = (h + 2 - k) // stride + 1
    wo = (w + 2 - k) // stride + 1
    n_pix = ho * wo

    eff_tile = min(tile_n, _round_up(n_pix, 128))
    n_pad = _round_up(n_pix, eff_tile)

    # Extra zero rows at the bottom of the padded image so the strided taps
    # directly produce >= n_pad flat pixels per batch (no separate pad pass).
    rows_needed = -(-n_pad // wo)                      # ceil(n_pad / wo)
    extra_in_rows = stride * (rows_needed - ho)

    kk_cin = k * k * c
    k_pad = _round_up(kk_cin, 16)                      # bf16 sublane-tile multiple

    x = image_nchw.astype(jnp.bfloat16)
    xp = jnp.pad(x, ((0, 0), (0, 0), (1, 1 + extra_in_rows), (1, 1)))

    taps = []
    for ky in range(k):
        for kx in range(k):
            t = jax.lax.slice(
                xp,
                (0, 0, ky, kx),
                (b, c,
                 ky + stride * (rows_needed - 1) + 1,
                 kx + stride * (wo - 1) + 1),
                (1, 1, stride, stride))                # (B, Cin, rows_needed, Wo)
            t = t.reshape(b, c, rows_needed * wo)[:, :, :n_pad]
            taps.append(t)
    if k_pad > kk_cin:                                 # explicit zero rows -> exact layout
        taps.append(jnp.zeros((b, k_pad - kk_cin, n_pad), jnp.bfloat16))
    patches = jnp.concatenate(taps, axis=1)            # (B, Kpad, n_pad) bf16
    return patches, ho, wo, n_pix, eff_tile, n_pad, k_pad


def shell_forward(image_nchw, params, *, tile_n=8192):
    """Runs Shell.forward. image_nchw: (B, Cin, H, W) float32."""
    wb_T, bb_col, wh_T, bh_col, c1, c2 = params
    b = image_nchw.shape[0]
    c_base, kk_cin = wb_T.shape
    c_heads = wh_T.shape[0]
    assert c_heads == c1 + c2
    assert tile_n % 128 == 0 and tile_n >= 128

    patches, ho, wo, n_pix, eff_tile, n_pad, k_pad = _build_patches_bf16(
        image_nchw, tile_n=tile_n)

    # Weights: base weight zero-padded on K to match the patch rows, both
    # matmul operands in bf16 (f32 accumulation inside the kernel).
    wb_bf = jnp.pad(wb_T, ((0, 0), (0, k_pad - kk_cin))).astype(jnp.bfloat16)
    wh_bf = wh_T.astype(jnp.bfloat16)

    grid = (b, n_pad // eff_tile)
    out = pl.pallas_call(
        shell_kernel,
        out_shape=jax.ShapeDtypeStruct((b, c_heads, n_pad), jnp.float32),
        grid=grid,
        in_specs=[
            pl.BlockSpec((None, k_pad, eff_tile), lambda bi, i: (bi, 0, i)),  # patches
            pl.BlockSpec((c_base, k_pad), lambda bi, i: (0, 0)),              # Wb
            pl.BlockSpec((c_base, 1), lambda bi, i: (0, 0)),                  # bb
            pl.BlockSpec((c_heads, c_base), lambda bi, i: (0, 0)),            # Wh (fused)
            pl.BlockSpec((c_heads, 1), lambda bi, i: (0, 0)),                 # bh (fused)
        ],
        out_specs=pl.BlockSpec((None, c_heads, eff_tile), lambda bi, i: (bi, 0, i)),
        compiler_params=pltpu.CompilerParams(
            dimension_semantics=("parallel", "parallel")),
    )(patches, wb_bf, bb_col, wh_bf, bh_col)

    out = out[:, :, :n_pix]                            # drop padded pixels
    out1 = out[:, :c1].reshape(b, c1, ho, wo)          # no transpose needed
    out2 = out[:, c1:].reshape(b, c2, ho, wo)
    return (out1, out2)   # tuple(hn(x) for hn in head_nets)


# ----------------------------------------------------------------------------
# Deterministic parameter construction (torch-style weight shapes -> matmul)
# ----------------------------------------------------------------------------
def make_params(key, cin=4, c_base=32, c1=16, c2=24, k=3):
    ks = jax.random.split(key, 6)
    # torch Conv2d weight layouts
    wb_t = jax.random.normal(ks[0], (c_base, cin, k, k), jnp.float32) * 0.1
    bb_t = jax.random.normal(ks[1], (c_base,), jnp.float32) * 0.1
    w1_t = jax.random.normal(ks[2], (c1, c_base, 1, 1), jnp.float32) * 0.1
    b1_t = jax.random.normal(ks[3], (c1,), jnp.float32) * 0.1
    w2_t = jax.random.normal(ks[4], (c2, c_base, 1, 1), jnp.float32) * 0.1
    b2_t = jax.random.normal(ks[5], (c2,), jnp.float32) * 0.1

    # matmul layouts for the transposed problem:
    #   Wb[o, (ky,kx,cin)] = wb_t[o, cin, ky, kx]
    wb_T = jnp.transpose(wb_t, (0, 2, 3, 1)).reshape(c_base, k * k * cin)
    wh_T = jnp.concatenate([w1_t.reshape(c1, c_base),
                            w2_t.reshape(c2, c_base)], axis=0)      # (c1+c2, cb)
    bb_col = bb_t.reshape(c_base, 1)
    bh_col = jnp.concatenate([b1_t, b2_t]).reshape(c1 + c2, 1)

    params = (wb_T, bb_col, wh_T, bh_col, c1, c2)
    torch_params = (wb_t, bb_t, w1_t, b1_t, w2_t, b2_t)
    return params, torch_params


def reference_forward(image_nchw, torch_params, *, mimic_kernel_precision=True):
    """Pure-JAX (lax.conv) reference matching PyTorch semantics.

    With mimic_kernel_precision, operands of both matmuls are rounded to
    bf16 (as the kernel does) so only f32 accumulation-order noise remains.
    """
    wb_t, bb_t, w1_t, b1_t, w2_t, b2_t = torch_params

    def _rd(a):
        return a.astype(jnp.bfloat16).astype(jnp.float32) if mimic_kernel_precision else a

    img = _rd(image_nchw)
    wb = _rd(wb_t)
    dn = jax.lax.conv_dimension_numbers(img.shape, wb.shape, ('NCHW', 'OIHW', 'NCHW'))
    feat = jax.lax.conv_general_dilated(img, wb, (2, 2), ((1, 1), (1, 1)),
                                        dimension_numbers=dn)
    feat = jnp.maximum(feat + bb_t[None, :, None, None], 0.0)
    feat = _rd(feat)
    w1 = _rd(w1_t)
    w2 = _rd(w2_t)
    dn1 = jax.lax.conv_dimension_numbers(feat.shape, w1.shape, ('NCHW', 'OIHW', 'NCHW'))
    o1 = jax.lax.conv_general_dilated(feat, w1, (1, 1), 'VALID',
                                      dimension_numbers=dn1) + b1_t[None, :, None, None]
    dn2 = jax.lax.conv_dimension_numbers(feat.shape, w2.shape, ('NCHW', 'OIHW', 'NCHW'))
    o2 = jax.lax.conv_general_dilated(feat, w2, (1, 1), 'VALID',
                                      dimension_numbers=dn2) + b2_t[None, :, None, None]
    return (o1, o2)


def _check(image, params, torch_params, tol=2e-3):
    fwd = jax.jit(functools.partial(shell_forward, params=params))
    out1, out2 = fwd(image)
    out1 = jax.block_until_ready(out1)
    out2 = jax.block_until_ready(out2)

    r1, r2 = reference_forward(image, torch_params, mimic_kernel_precision=True)

    assert out1.shape == r1.shape, (out1.shape, r1.shape)
    assert out2.shape == r2.shape, (out2.shape, r2.shape)
    assert jnp.allclose(out1, r1, rtol=tol, atol=tol)
    assert jnp.allclose(out2, r2, rtol=tol, atol=tol)
    return out1, out2


if __name__ == "__main__":
    key = jax.random.PRNGKey(0)
    k_img, k_img2, k_par = jax.random.split(key, 3)

    params, torch_params = make_params(k_par)

    # NCHW input, matching the PyTorch module's convention
    image = jax.random.normal(k_img, (2, 4, 16, 16), jnp.float32)
    out1, out2 = _check(image, params, torch_params)
    assert out1.shape == (2, 16, 8, 8), out1.shape
    assert out2.shape == (2, 24, 8, 8), out2.shape

    # second shape exercises the ragged-N / padded-pixel path
    image2 = jax.random.normal(k_img2, (2, 4, 34, 34), jnp.float32)
    o1b, o2b = _check(image2, params, torch_params)
    assert o1b.shape == (2, 16, 17, 17), o1b.shape
    assert o2b.shape == (2, 24, 17, 17), o2b.shape

    print("KERNEL_OK")
</pallas_src>

<mosaic_0001>
module attributes {stable_mosaic.version = 11 : i64} {
  func.func @shell_kernel(%arg0: i32, %arg1: i32, %arg2: memref<1x48x128xbf16, #tpu.memory_space<vmem>>, %arg3: memref<32x48xbf16, #tpu.memory_space<vmem>>, %arg4: memref<32x1xf32, #tpu.memory_space<vmem>>, %arg5: memref<40x32xbf16, #tpu.memory_space<vmem>>, %arg6: memref<40x1xf32, #tpu.memory_space<vmem>>, %arg7: memref<1x40x128xf32, #tpu.memory_space<vmem>>) attributes {dimension_semantics = [#tpu.dimension_semantics<parallel>, #tpu.dimension_semantics<parallel>], iteration_bounds = array<i64: 2, 1>, scalar_prefetch = 0 : i64, scratch_operands = 0 : i64, tpu.core_type = #tpu.core_type<tc>, window_params = [{transform_indices = @transform_0, window_bounds = array<i64: 1, 48, 128>}, {pipeline_mode = #tpu.pipeline_mode<synchronous>, transform_indices = @transform_1, window_bounds = array<i64: 32, 48>}, {pipeline_mode = #tpu.pipeline_mode<synchronous>, transform_indices = @transform_2, window_bounds = array<i64: 32, 1>}, {pipeline_mode = #tpu.pipeline_mode<synchronous>, transform_indices = @transform_3, window_bounds = array<i64: 40, 32>}, {pipeline_mode = #tpu.pipeline_mode<synchronous>, transform_indices = @transform_4, window_bounds = array<i64: 40, 1>}, {transform_indices = @transform_5, window_bounds = array<i64: 1, 40, 128>}]} {
    %c0 = arith.constant 0 : index
    %c0_0 = arith.constant 0 : index
    %0 = vector.load %arg3[%c0, %c0_0] : memref<32x48xbf16, #tpu.memory_space<vmem>>, vector<32x48xbf16>
    %c0_1 = arith.constant 0 : index
    %c0_2 = arith.constant 0 : index
    %c0_3 = arith.constant 0 : index
    %1 = vector.load %arg2[%c0_1, %c0_2, %c0_3] : memref<1x48x128xbf16, #tpu.memory_space<vmem>>, vector<1x48x128xbf16>
    %2 = vector.shape_cast %1 : vector<1x48x128xbf16> to vector<48x128xbf16>
    %cst = arith.constant dense<0.000000e+00> : vector<32x128xf32>
    %3 = tpu.matmul %0, %2, %cst {dimension_numbers = #tpu.dot_dimension_numbers<[1], [0], [0], [1], [0, 0, 1, 1], [], []>} : vector<32x48xbf16>, vector<48x128xbf16>, vector<32x128xf32> -> vector<32x128xf32>
    %c0_4 = arith.constant 0 : index
    %c0_5 = arith.constant 0 : index
    %4 = vector.load %arg4[%c0_4, %c0_5] : memref<32x1xf32, #tpu.memory_space<vmem>>, vector<32x1xf32>
    %5 = vector.broadcast %4 : vector<32x1xf32> to vector<32x128xf32>
    %6 = arith.addf %3, %5 : vector<32x128xf32>
    %cst_6 = arith.constant 0.000000e+00 : f32
    %7 = vector.broadcast %cst_6 : f32 to vector<32x128xf32>
    %8 = arith.maximumf %6, %7 : vector<32x128xf32>
    %c0_7 = arith.constant 0 : index
    %c0_8 = arith.constant 0 : index
    %9 = vector.load %arg5[%c0_7, %c0_8] : memref<40x32xbf16, #tpu.memory_space<vmem>>, vector<40x32xbf16>
    %10 = arith.truncf %8 : vector<32x128xf32> to vector<32x128xbf16>
    %cst_9 = arith.constant dense<0.000000e+00> : vector<40x128xf32>
    %11 = tpu.matmul %9, %10, %cst_9 {dimension_numbers = #tpu.dot_dimension_numbers<[1], [0], [0], [1], [0, 0, 1, 1], [], []>} : vector<40x32xbf16>, vector<32x128xbf16>, vector<40x128xf32> -> vector<40x128xf32>
    %c0_10 = arith.constant 0 : index
    %c0_11 = arith.constant 0 : index
    %12 = vector.load %arg6[%c0_10, %c0_11] : memref<40x1xf32, #tpu.memory_space<vmem>>, vector<40x1xf32>
    %13 = vector.broadcast %12 : vector<40x1xf32> to vector<40x128xf32>
    %14 = arith.addf %11, %13 : vector<40x128xf32>
    %c0_12 = arith.constant 0 : index
    %c0_13 = arith.constant 0 : index
    %c0_14 = arith.constant 0 : index
    %15 = vector.load %arg7[%c0_12, %c0_13, %c0_14] : memref<1x40x128xf32, #tpu.memory_space<vmem>>, vector<1x40x128xf32>
    %16 = vector.shape_cast %15 : vector<1x40x128xf32> to vector<40x128xf32>
    %17 = vector.shape_cast %14 : vector<40x128xf32> to vector<1x40x128xf32>
    tpu.vector_store %arg7[%c0_12, %c0_13, %c0_14], %17 {strides = array<i32>} : memref<1x40x128xf32, #tpu.memory_space<vmem>>, vector<1x40x128xf32>,
    return
  }
  func.func @transform_0(%arg0: i32, %arg1: i32) -> (i32, i32, i32) {
    %c0_i32 = arith.constant 0 : i32
    %c0_i32_0 = arith.constant 0 : i32
    return %arg0, %c0_i32, %arg1 : i32, i32, i32
  }
  func.func @transform_1(%arg0: i32, %arg1: i32) -> (i32, i32) {
    %c0_i32 = arith.constant 0 : i32
    %c0_i32_0 = arith.constant 0 : i32
    %c0_i32_1 = arith.constant 0 : i32
    return %c0_i32, %c0_i32_0 : i32, i32
  }
  func.func @transform_2(%arg0: i32, %arg1: i32) -> (i32, i32) {
    %c0_i32 = arith.constant 0 : i32
    %c0_i32_0 = arith.constant 0 : i32
    %c0_i32_1 = arith.constant 0 : i32
    return %c0_i32, %c0_i32_0 : i32, i32
  }
  func.func @transform_3(%arg0: i32, %arg1: i32) -> (i32, i32) {
    %c0_i32 = arith.constant 0 : i32
    %c0_i32_0 = arith.constant 0 : i32
    %c0_i32_1 = arith.constant 0 : i32
    return %c0_i32, %c0_i32_0 : i32, i32
  }
  func.func @transform_4(%arg0: i32, %arg1: i32) -> (i32, i32) {
    %c0_i32 = arith.constant 0 : i32
    %c0_i32_0 = arith.constant 0 : i32
    %c0_i32_1 = arith.constant 0 : i32
    return %c0_i32, %c0_i32_0 : i32, i32
  }
  func.func @transform_5(%arg0: i32, %arg1: i32) -> (i32, i32, i32) {
    %c0_i32 = arith.constant 0 : i32
    %c0_i32_0 = arith.constant 0 : i32
    return %arg0, %c0_i32, %arg1 : i32, i32, i32
  }
}

</mosaic_0001>

<llo_original>
// kernel: shell_forward.1
$region0: #{shell_forward.1}
  #allocation0 [shape = 'u32[]', space=smem, size = 0x4, offset = 0x4, fixed_abs, tag = 'smem constant byte address 0x4 - core index']
  #allocation1 [shape = 'u32[144,128]{1,0:T(1,128)}', space=vmem, size = 0x12000, scoped, tag = 'internal scratch']
  %s0 = inlined_call_operand.vmem [shape: bf16[2,48,128], index: 0, kind: input, shape index: {}]
  %s1 = inlined_call_operand.vmem [shape: bf16[32,48], index: 1, kind: input, shape index: {}]
  %s2 = inlined_call_operand.vmem [shape: f32[32,1], index: 2, kind: input, shape index: {}]
  %s3 = inlined_call_operand.vmem [shape: bf16[40,32], index: 3, kind: input, shape index: {}]
  %s4 = inlined_call_operand.vmem [shape: f32[40,1], index: 4, kind: input, shape index: {}]
  %s5 = inlined_call_operand.vmem [shape: f32[2,40,128], index: 5, kind: output, shape index: {}]
  %s6 = sld [smem:[#allocation0]]
  $region53: #{shell_forward.1} parent=0
    _
  %s8 = ssub.s32 1, %s6
  %s9 = scalar_select 0, %s8, %s6
  loop: start=0, step=1, limit=4
  $region2: #{shell_forward.1} parent=0 // loop_pre_header
    _
  $region3: #{shell_forward.1} parent=0 // loop_header
    %s11 = sphi 0, %s15
    %p12 = scmp.ge.s32.totalorder %s11, 4
    %s18 = sphi 0, %s30
    %s19 = sphi 0, %s26
    %s20 = sphi 0, %s18
    %s21 = sphi 0, %s19
    %s22 = sphi 0, %s20
    %s23 = sphi 0, %s21
    %s35 = sphi 0, %s37
    %s38 = sphi 0, %s35
    %s39 = sphi 0, %s38
    %s55 = sphi 0, %s39
    %s59 = sphi 0, %s59
    %s61 = sphi 0, %s59
    %s62 = sphi 0, %s61
    %s76 = sphi 0, %s62
    %s80 = sphi 0, %s80
    %s82 = sphi 0, %s80
    %s83 = sphi 0, %s82
    %s97 = sphi 0, %s83
    %s101 = sphi 0, %s101
    %s103 = sphi 0, %s101
    %s104 = sphi 0, %s103
    %s118 = sphi 0, %s104
    %s122 = sphi 0, %s122
    %s124 = sphi 0, %s122
    %s125 = sphi 0, %s124
    %s139 = sphi 0, %s125
    %s147 = sphi 0, %s149
    %s150 = sphi 0, %s147
    %s151 = sphi 0, %s150
    %s167 = sphi 0, %s151
  $region4: #{shell_forward.1} parent=0 // loop_header_branch
    %14 = sbr.rel (%p12) target = $region8
  $region5: #{shell_forward.1} parent=0 // loop_body
    %s16 = ssub.s32 %s11, 1
    %s17 = ssub.s32 %s11, 2
    %s24 = sadd.s32 1, %s19
    %p25 = scmp.ge.s32.totalorder %s24, 1
    %s26 = scalar_select %p25, 0, %s24
    %s27 = sadd.s32 1, %s18
    %s28 = scalar_select %p25, %s27, %s18
    %p29 = scmp.ge.s32.totalorder %s28, 2
    %s30 = scalar_select %p29, 0, %s28
    %s31 = ssub.s32 %s18, %s30
    %s32 = ssub.s32 %s19, %s26
    %s33 = sor.u32 %s31, %s32
    %p34 = scmp.eq.s32.totalorder %s33, 0
    %s36 = sadd.s32 %s35, 1
    %s37 = scalar_select %p34, %s35, %s36
    %p40 = pneg %p34
    %p41 = scmp.eq.s32.totalorder %s11, 1
    %p42 = por %p40, %p41
    %p43 = scmp.ne.s32.totalorder %s35, %s38
    %p44 = scmp.eq.s32.totalorder %s11, 0
    %p45 = por %p43, %p44
    %p46 = scmp.ne.s32.totalorder %s35, %s38
    %p47 = scmp.eq.s32.totalorder %s16, 1
    %p48 = por %p46, %p47
    %p49 = scmp.ne.s32.totalorder %s38, %s39
    %p50 = scmp.eq.s32.totalorder %s16, 0
    %p51 = por %p49, %p50
    %p52 = scmp.ne.s32.totalorder %s38, %s39
    %p53 = scmp.eq.s32.totalorder %s17, 1
    %p54 = por %p52, %p53
    %p56 = scmp.ne.s32.totalorder %s39, %s55
    %p57 = scmp.eq.s32.totalorder %s17, 0
    %p58 = por %p56, %p57
    %s60 = sadd.s32 %s59, 1
    %p63 = scmp.eq.s32.totalorder %s11, 1
    %p64 = scmp.ne.s32.totalorder %s59, %s61
    %p65 = scmp.eq.s32.totalorder %s11, 0
    %p66 = por %p64, %p65
    %p67 = scmp.ne.s32.totalorder %s59, %s61
    %p68 = scmp.eq.s32.totalorder %s16, 1
    %p69 = por %p67, %p68
    %p70 = scmp.ne.s32.totalorder %s61, %s62
    %p71 = scmp.eq.s32.totalorder %s16, 0
    %p72 = por %p70, %p71
    %p73 = scmp.ne.s32.totalorder %s61, %s62
    %p74 = scmp.eq.s32.totalorder %s17, 1
    %p75 = por %p73, %p74
    %p77 = scmp.ne.s32.totalorder %s62, %s76
    %p78 = scmp.eq.s32.totalorder %s17, 0
    %p79 = por %p77, %p78
    %s81 = sadd.s32 %s80, 1
    %p84 = scmp.eq.s32.totalorder %s11, 1
    %p85 = scmp.ne.s32.totalorder %s80, %s82
    %p86 = scmp.eq.s32.totalorder %s11, 0
    %p87 = por %p85, %p86
    %p88 = scmp.ne.s32.totalorder %s80, %s82
    %p89 = scmp.eq.s32.totalorder %s16, 1
    %p90 = por %p88, %p89
    %p91 = scmp.ne.s32.totalorder %s82, %s83
    %p92 = scmp.eq.s32.totalorder %s16, 0
    %p93 = por %p91, %p92
    %p94 = scmp.ne.s32.totalorder %s82, %s83
    %p95 = scmp.eq.s32.totalorder %s17, 1
    %p96 = por %p94, %p95
    %p98 = scmp.ne.s32.totalorder %s83, %s97
    %p99 = scmp.eq.s32.totalorder %s17, 0
    %p100 = por %p98, %p99
    %s102 = sadd.s32 %s101, 1
    %p105 = scmp.eq.s32.totalorder %s11, 1
    %p106 = scmp.ne.s32.totalorder %s101, %s103
    %p107 = scmp.eq.s32.totalorder %s11, 0
    %p108 = por %p106, %p107
    %p109 = scmp.ne.s32.totalorder %s101, %s103
    %p110 = scmp.eq.s32.totalorder %s16, 1
    %p111 = por %p109, %p110
    %p112 = scmp.ne.s32.totalorder %s103, %s104
    %p113 = scmp.eq.s32.totalorder %s16, 0
    %p114 = por %p112, %p113
    %p115 = scmp.ne.s32.totalorder %s103, %s104
    %p116 = scmp.eq.s32.totalorder %s17, 1
    %p117 = por %p115, %p116
    %p119 = scmp.ne.s32.totalorder %s104, %s118
    %p120 = scmp.eq.s32.totalorder %s17, 0
    %p121 = por %p119, %p120
    %s123 = sadd.s32 %s122, 1
    %p126 = scmp.eq.s32.totalorder %s11, 1
    %p127 = scmp.ne.s32.totalorder %s122, %s124
    %p128 = scmp.eq.s32.totalorder %s11, 0
    %p129 = por %p127, %p128
    %p130 = scmp.ne.s32.totalorder %s122, %s124
    %p131 = scmp.eq.s32.totalorder %s16, 1
    %p132 = por %p130, %p131
    %p133 = scmp.ne.s32.totalorder %s124, %s125
    %p134 = scmp.eq.s32.totalorder %s16, 0
    %p135 = por %p133, %p134
    %p136 = scmp.ne.s32.totalorder %s124, %s125
    %p137 = scmp.eq.s32.totalorder %s17, 1
    %p138 = por %p136, %p137
    %p140 = scmp.ne.s32.totalorder %s125, %s139
    %p141 = scmp.eq.s32.totalorder %s17, 0
    %p142 = por %p140, %p141
    %s143 = ssub.s32 %s18, %s30
    %s144 = ssub.s32 %s19, %s26
    %s145 = sor.u32 %s143, %s144
    %p146 = scmp.eq.s32.totalorder %s145, 0
    %s148 = sadd.s32 %s147, 1
    %s149 = scalar_select %p146, %s147, %s148
    %p152 = pneg %p146
    %p153 = scmp.eq.s32.totalorder %s11, 1
    %p154 = por %p152, %p153
    %p155 = scmp.ne.s32.totalorder %s147, %s150
    %p156 = scmp.eq.s32.totalorder %s11, 0
    %p157 = por %p155, %p156
    %p158 = scmp.ne.s32.totalorder %s147, %s150
    %p159 = scmp.eq.s32.totalorder %s16, 1
    %p160 = por %p158, %p159
    %p161 = scmp.ne.s32.totalorder %s150, %s151
    %p162 = scmp.eq.s32.totalorder %s16, 0
    %p163 = por %p161, %p162
    %p164 = scmp.ne.s32.totalorder %s150, %s151
    %p165 = scmp.eq.s32.totalorder %s17, 1
    %p166 = por %p164, %p165
    %p168 = scmp.ne.s32.totalorder %s151, %s167
    %p169 = scmp.eq.s32.totalorder %s17, 0
    %p170 = por %p168, %p169
    %p171 = scmp.le.s32.totalorder 1, %s11
    %p172 = scmp.lt.s32.totalorder %s11, 3
    %p173 = pnand %p171, %p172
    %p174 = pneg %p173
    // Predicated region
    $region9: #{shell_forward.1} parent=5 // pred_check
      _
    $region10: #{shell_forward.1} parent=5 // pred_check_branch
      %176 = sbr.rel (%p173) target = $region12
    $region11: #{shell_forward.1} parent=5 // pred_region
      %s177 = ssub.s32 %s11, 1
      // Predicated region
      $region13: #{shell_forward.1} parent=11 // pred_check
        %p178 = pneg %p72
      $region14: #{shell_forward.1} parent=11 // pred_check_branch
        %180 = sbr.rel (%p178) target = $region16
      $region15: #{shell_forward.1} parent=11 // pred_region
        _
      $region16: #{shell_forward.1} parent=11 // pred_fallthru
        _
      // Predicated region
      $region17: #{shell_forward.1} parent=11 // pred_check
        %p181 = pneg %p93
      $region18: #{shell_forward.1} parent=11 // pred_check_branch
        %183 = sbr.rel (%p181) target = $region20
      $region19: #{shell_forward.1} parent=11 // pred_region
        _
      $region20: #{shell_forward.1} parent=11 // pred_fallthru
        _
      // Predicated region
      $region21: #{shell_forward.1} parent=11 // pred_check
        %p184 = pneg %p114
      $region22: #{shell_forward.1} parent=11 // pred_check_branch
        %186 = sbr.rel (%p184) target = $region24
      $region23: #{shell_forward.1} parent=11 // pred_region
        _
      $region24: #{shell_forward.1} parent=11 // pred_fallthru
        _
      // Predicated region
      $region25: #{shell_forward.1} parent=11 // pred_check
        %p187 = pneg %p135
      $region26: #{shell_forward.1} parent=11 // pred_check_branch
        %189 = sbr.rel (%p187) target = $region28
      $region27: #{shell_forward.1} parent=11 // pred_region
        _
      $region28: #{shell_forward.1} parent=11 // pred_fallthru
        _
    $region12: #{shell_forward.1} parent=5 // pred_fallthru
      _
    %p190 = scmp.lt.s32.totalorder %s11, 2
    // Predicated region
    $region29: #{shell_forward.1} parent=5 // pred_check
      %p191 = pneg %p190
    $region30: #{shell_forward.1} parent=5 // pred_check_branch
      %193 = sbr.rel (%p191) target = $region32
    $region31: #{shell_forward.1} parent=5 // pred_region
      // Predicated region
      $region33: #{shell_forward.1} parent=31 // pred_check
        %p194 = pneg %p45
      $region34: #{shell_forward.1} parent=31 // pred_check_branch
        %196 = sbr.rel (%p194) target = $region36
      $region35: #{shell_forward.1} parent=31 // pred_region
        %p197 = scmp.lt.s32.totalorder %s18, 1
        %s198 = scalar_select %p197, %s18, 1
        %p199 = scmp.lt.s32.totalorder %s19, 0
        %s200 = scalar_select %p199, %s19, 0
        %s201 = smul.addr %s198, 6
        %s202 = sadd.s32 %s200, %s201
        %s203 = smul.addr %s202, 4
        %s204 = scalar_lea.vmem %s0, %s203
      $region36: #{shell_forward.1} parent=31 // pred_fallthru
        _
    $region32: #{shell_forward.1} parent=5 // pred_fallthru
      _
    %p205 = scmp.le.s32.totalorder 1, %s11
    %p206 = scmp.lt.s32.totalorder %s11, 3
    %p207 = pnand %p205, %p206
    %p208 = pneg %p207
    // Predicated region
    $region37: #{shell_forward.1} parent=5 // pred_check
      _
    $region38: #{shell_forward.1} parent=5 // pred_check_branch
      %210 = sbr.rel (%p207) target = $region40
    $region39: #{shell_forward.1} parent=5 // pred_region
      %s211 = ssub.s32 %s11, 1
      %p212 = scmp.lt.s32.totalorder %s20, 1
      %s213 = scalar_select %p212, %s20, 1
      %p214 = scmp.lt.s32.totalorder %s21, 0
      %s215 = scalar_select %p214, %s21, 0
      %s216 = smul.addr %s213, 6
      %s217 = sadd.s32 %s215, %s216
      %s218 = smul.addr %s217, 4
      %s219 = scalar_lea.vmem %s0, %s218
      %p220 = pneg %p51
      %p221 = pneg %p48
      %p222 = pneg %p72
      %p223 = pneg %p69
      %p224 = pneg %p93
      %p225 = pneg %p90
      %p226 = pneg %p114
      %p227 = pneg %p111
      %p228 = pneg %p135
      %p229 = pneg %p132
      %p230 = pneg %p163
      %p231 = pneg %p160
      %p232 = scmp.lt.s32.totalorder %s20, 1
      %s233 = scalar_select %p232, %s20, 1
      %p234 = scmp.lt.s32.totalorder %s21, 0
      %s235 = scalar_select %p234, %s21, 0
      %s236 = smul.addr %s233, 5
      %s237 = sadd.s32 %s235, %s236
      %s238 = smul.addr %s237, 8
      %s239 = scalar_lea.vmem %s5, %s238
      %p240 = scmp.lt.s32.totalorder %s20, 1
      %s241 = scalar_select %p240, %s20, 1
      %p242 = scmp.lt.s32.totalorder %s21, 0
      %s243 = scalar_select %p242, %s21, 0
      %s244 = smul.addr %s241, 6
      %s245 = sadd.s32 %s243, %s244
      %s246 = smul.addr %s245, 4
      %s247 = scalar_lea.vmem %s0, %s246
      %p248 = scmp.lt.s32.totalorder %s20, 1
      %s249 = scalar_select %p248, %s20, 1
      %p250 = scmp.lt.s32.totalorder %s21, 0
      %s251 = scalar_select %p250, %s21, 0
      %s252 = smul.addr %s249, 5
      %s253 = sadd.s32 %s251, %s252
      %s254 = smul.addr %s253, 8
      %s255 = scalar_lea.vmem %s5, %s254
      %v257 = vld [vmem:[%s1] sm:$0xf]
      %v258 = vld [vmem:[%s1 + $0x4] sm:$0xf]
      %v259 = vld [vmem:[%s1 + $0x8] sm:$0xf]
      %v260 = vld [vmem:[%s1 + $0xc] sm:$0xf]
      %v261 = vld [vmem:[%s247] sm:$0xf]
      %v262 = vld [vmem:[%s247 + $0x4] sm:$0xf]
      %v263 = vld [vmem:[%s247 + $0x8] sm:$0xf]
      %v264 = vld [vmem:[%s247 + $0xc] sm:$0xf]
      %v265 = vld [vmem:[%s247 + $0x10] sm:$0xf]
      %v266 = vld [vmem:[%s247 + $0x14] sm:$0xf]
      %v267 = vld [vmem:[%s2] sm:$0xff]
      %v268 = vld [vmem:[%s2 + $0x8] sm:$0xff]
      %v269 = vld [vmem:[%s2 + $0x10] sm:$0xff]
      %v270 = vld [vmem:[%s2 + $0x18] sm:$0xff]
      %272 = vset.pattern.permute.xlu0 0
      %273 = vperm.xlu0 %272, %v267
      %v274 = vpop.permute.xlu0 %273
      %277 = vset.pattern.permute.xlu0 0
      %278 = vperm.xlu0 %277, %v268
      %v279 = vpop.permute.xlu0 %278
      %282 = vset.pattern.permute.xlu0 0
      %283 = vperm.xlu0 %282, %v269
      %v284 = vpop.permute.xlu0 %283
      %287 = vset.pattern.permute.xlu0 0
      %288 = vperm.xlu0 %287, %v270
      %v289 = vpop.permute.xlu0 %288
      %v295 = vunpack.c.l.b16 %v257
      %v296 = vunpack.c.l.b16 %v258
      %v297 = vunpack.c.l.b16 %v259
      %v298 = vunpack.c.l.b16 %v260
      %v299 = vpack.c.b16 %v296, %v295
      %v300 = vpack.c.b16 %v298, %v297
      %v307 = vunpack.c.l.b16 %v261
      %v308 = vunpack.c.l.b16 %v262
      %v309 = vunpack.c.l.b16 %v263
      %v310 = vunpack.c.l.b16 %v264
      %v311 = vunpack.c.l.b16 %v265
      %v312 = vunpack.c.l.b16 %v266
      %v313 = vpack.c.b16 %v308, %v307
      %v314 = vpack.c.b16 %v310, %v309
      %v315 = vpack.c.b16 %v312, %v311
      %vm319 = vcmask 392192
      %v321 = vsel %vm319, %v299, 0
      %v324 = vsel %vm319, %v300, 0
      %326 = vmatprep.subr.bf16.mxu0 0
      %327 = vmatpush1.bf16.msra.mxu0 0
      %328 = vmatprep.subr.bf16.mxu0 0
      %329 = vmatpush1.bf16.msra.mxu0 0
      %330 = vmatprep.subr.bf16.mxu0 0
      %331 = vmatpush1.bf16.msra.mxu0 0
      %332 = vmatprep.subr.bf16.mxu0 0
      %333 = vmatpush1.bf16.msra.mxu0 0
      %334 = vmatprep.subr.bf16.mxu0 0
      %335 = vmatpush1.bf16.msra.mxu0 0
      %336 = vmatprep.subr.bf16.mxu0 0
      %337 = vmatpush1.bf16.msra.mxu0 %v315
      %338 = vmatprep.subr.bf16.mxu0 0
      %339 = vmatpush1.bf16.msra.mxu0 %v314
      %340 = vmatprep.subr.bf16.mxu0 0
      %341 = vmatpush1.bf16.msra.mxu0 %v313
      %342 = vmatprep.subr.bf16.mxu0 0
      %343 = vmatpush2.bf16.msra.mxu0 0
      %344 = vmatprep.subr.bf16.mxu0 0
      %345 = vmatpush2.bf16.msra.mxu0 0
      %346 = vmatprep.subr.bf16.mxu0 0
      %347 = vmatpush2.bf16.msra.mxu0 0
      %348 = vmatprep.subr.bf16.mxu0 0
      %349 = vmatpush2.bf16.msra.mxu0 0
      %350 = vmatprep.subr.bf16.mxu0 0
      %351 = vmatpush2.bf16.msra.mxu0 0
      %352 = vmatprep.subr.bf16.mxu0 0
      %353 = vmatpush2.bf16.msra.mxu0 0
      %354 = vmatprep.subr.bf16.mxu0 0
      %355 = vmatpush2.bf16.msra.mxu0 0
      %356 = vmatprep.subr.bf16.mxu0 0
      %357 = vmatpush2.bf16.msra.mxu0 0
      %358 = vmatprep.mubr.bf16.mxu0 0
      %359 = vmatmul.mubr.bf16.gmra.mxu0 %v321
      %v360 = vpop.f32.mrf.mxu0
      %v361 = vadd.f32 %v274, %v360
      %v362 = vpop.f32.mrf.mxu0
      %v363 = vpop.f32.mrf.mxu0
      %v364 = vadd.f32 %v279, %v363
      %v365 = vpop.f32.mrf.mxu0
      %366 = vmatprep.mubr.bf16.mxu0 0
      %367 = vmatmul.mubr.bf16.gmra.mxu0 %v324
      %v368 = vpop.f32.mrf.mxu0
      %v369 = vadd.f32 %v284, %v368
      %v370 = vpop.f32.mrf.mxu0
      %v371 = vpop.f32.mrf.mxu0
      %v372 = vadd.f32 %v289, %v371
      %v373 = vpop.f32.mrf.mxu0
      %374 = vdwg.mxu0
      %v375 = vmax.f32 %v361, 0.0
      %v376 = vmax.f32 %v364, 0.0
      %v377 = vmax.f32 %v369, 0.0
      %v378 = vmax.f32 %v372, 0.0
      %v379 = vld [vmem:[%s3] sm:$0xf]
      %v380 = vld [vmem:[%s3 + $0x4] sm:$0xf]
      %v381 = vld [vmem:[%s3 + $0x8] sm:$0xf]
      %v382 = vld [vmem:[%s3 + $0xc] sm:$0xf]
      %v383 = vld [vmem:[%s3 + $0x10] sm:$0xf]
      %v384 = vpack.c.bf16 %v376, %v375
      %v385 = vpack.c.bf16 %v378, %v377
      %v386 = vld [vmem:[%s4] sm:$0xff]
      %v387 = vld [vmem:[%s4 + $0x8] sm:$0xff]
      %v388 = vld [vmem:[%s4 + $0x10] sm:$0xff]
      %v389 = vld [vmem:[%s4 + $0x18] sm:$0xff]
      %v390 = vld [vmem:[%s4 + $0x20] sm:$0xff]
      %392 = vset.pattern.permute.xlu0 0
      %393 = vperm.xlu0 %392, %v386
      %v394 = vpop.permute.xlu0 %393
      %397 = vset.pattern.permute.xlu0 0
      %398 = vperm.xlu0 %397, %v387
      %v399 = vpop.permute.xlu0 %398
      %402 = vset.pattern.permute.xlu0 0
      %403 = vperm.xlu0 %402, %v388
      %v404 = vpop.permute.xlu0 %403
      %407 = vset.pattern.permute.xlu0 0
      %408 = vperm.xlu0 %407, %v389
      %v409 = vpop.permute.xlu0 %408
      %412 = vset.pattern.permute.xlu0 0
      %413 = vperm.xlu0 %412, %v390
      %v414 = vpop.permute.xlu0 %413
      %v421 = vunpack.c.l.b16 %v379
      %v422 = vunpack.c.l.b16 %v380
      %v423 = vunpack.c.l.b16 %v381
      %v424 = vunpack.c.l.b16 %v382
      %v425 = vunpack.c.l.b16 %v383
      %v426 = vpack.c.b16 %v422, %v421
      %v427 = vpack.c.b16 %v424, %v423
      %v428 = vpack.c.b16 %v425, %v425
      %vm429 = vcmask 261120
      %v431 = vsel %vm429, %v426, 0
      %v434 = vsel %vm429, %v427, 0
      %v437 = vsel %vm429, %v428, 0
      %439 = vmatprep.subr.bf16.mxu0 0
      %440 = vmatpush1.bf16.msra.mxu0 0
      %441 = vmatprep.subr.bf16.mxu0 0
      %442 = vmatpush1.bf16.msra.mxu0 0
      %443 = vmatprep.subr.bf16.mxu0 0
      %444 = vmatpush1.bf16.msra.mxu0 0
      %445 = vmatprep.subr.bf16.mxu0 0
      %446 = vmatpush1.bf16.msra.mxu0 0
      %447 = vmatprep.subr.bf16.mxu0 0
      %448 = vmatpush1.bf16.msra.mxu0 0
      %449 = vmatprep.subr.bf16.mxu0 0
      %450 = vmatpush1.bf16.msra.mxu0 0
      %451 = vmatprep.subr.bf16.mxu0 0
      %452 = vmatpush1.bf16.msra.mxu0 %v385
      %453 = vmatprep.subr.bf16.mxu0 0
      %454 = vmatpush1.bf16.msra.mxu0 %v384
      %455 = vmatprep.subr.bf16.mxu0 0
      %456 = vmatpush2.bf16.msra.mxu0 0
      %457 = vmatprep.subr.bf16.mxu0 0
      %458 = vmatpush2.bf16.msra.mxu0 0
      %459 = vmatprep.subr.bf16.mxu0 0
      %460 = vmatpush2.bf16.msra.mxu0 0
      %461 = vmatprep.subr.bf16.mxu0 0
      %462 = vmatpush2.bf16.msra.mxu0 0
      %463 = vmatprep.subr.bf16.mxu0 0
      %464 = vmatpush2.bf16.msra.mxu0 0
      %465 = vmatprep.subr.bf16.mxu0 0
      %466 = vmatpush2.bf16.msra.mxu0 0
      %467 = vmatprep.subr.bf16.mxu0 0
      %468 = vmatpush2.bf16.msra.mxu0 0
      %469 = vmatprep.subr.bf16.mxu0 0
      %470 = vmatpush2.bf16.msra.mxu0 0
      %471 = vmatprep.mubr.bf16.mxu0 0
      %472 = vmatmul.mubr.bf16.gmra.mxu0 %v431
      %v473 = vpop.f32.mrf.mxu0
      %v474 = vadd.f32 %v394, %v473
      %v475 = vpop.f32.mrf.mxu0
      %v476 = vpop.f32.mrf.mxu0
      %v477 = vadd.f32 %v399, %v476
      %v478 = vpop.f32.mrf.mxu0
      %479 = vmatprep.mubr.bf16.mxu0 0
      %480 = vmatmul.mubr.bf16.gmra.mxu0 %v434
      %v481 = vpop.f32.mrf.mxu0
      %v482 = vadd.f32 %v404, %v481
      %v483 = vpop.f32.mrf.mxu0
      %v484 = vpop.f32.mrf.mxu0
      %v485 = vadd.f32 %v409, %v484
      %v486 = vpop.f32.mrf.mxu0
      %487 = vmatprep.mubr.bf16.mxu0 0
      %488 = vmatmul.mubr.bf16.gmra.mxu0 %v437
      %v489 = vpop.f32.mrf.mxu0
      %v490 = vadd.f32 %v414, %v489
      %v491 = vpop.f32.mrf.mxu0
      %v492 = vpop.f32.mrf.mxu0
      %v493 = vpop.f32.mrf.mxu0
      %494 = vdwg.mxu0
      %495 = vst [vmem:[%s255] sm:$0xff] %v474
      %496 = vst [vmem:[%s255 + $0x8] sm:$0xff] %v477
      %497 = vst [vmem:[%s255 + $0x10] sm:$0xff] %v482
      %498 = vst [vmem:[%s255 + $0x18] sm:$0xff] %v485
      %499 = vst [vmem:[%s255 + $0x20] sm:$0xff] %v490
      %p500 = scmp.lt.s32.totalorder %s20, 1
      %s501 = scalar_select %p500, %s20, 1
      %p502 = scmp.lt.s32.totalorder %s21, 0
      %s503 = scalar_select %p502, %s21, 0
      %s504 = smul.addr %s501, 5
      %s505 = sadd.s32 %s503, %s504
      %s506 = smul.addr %s505, 8
      %s507 = scalar_lea.vmem %s5, %s506
      // Predicated region
      $region41: #{shell_forward.1} parent=39 // pred_check
        %p508 = pneg %p160
      $region42: #{shell_forward.1} parent=39 // pred_check_branch
        %510 = sbr.rel (%p508) target = $region44
      $region43: #{shell_forward.1} parent=39 // pred_region
        _
      $region44: #{shell_forward.1} parent=39 // pred_fallthru
        _
    $region40: #{shell_forward.1} parent=5 // pred_fallthru
      _
    %p511 = scmp.le.s32.totalorder 2, %s11
    // Predicated region
    $region45: #{shell_forward.1} parent=5 // pred_check
      %p512 = pneg %p511
    $region46: #{shell_forward.1} parent=5 // pred_check_branch
      %514 = sbr.rel (%p512) target = $region48
    $region47: #{shell_forward.1} parent=5 // pred_region
      %s515 = ssub.s32 %s11, 2
      // Predicated region
      $region49: #{shell_forward.1} parent=47 // pred_check
        %p516 = pneg %p166
      $region50: #{shell_forward.1} parent=47 // pred_check_branch
        %518 = sbr.rel (%p516) target = $region52
      $region51: #{shell_forward.1} parent=47 // pred_region
        %p519 = scmp.lt.s32.totalorder %s22, 1
        %s520 = scalar_select %p519, %s22, 1
        %p521 = scmp.lt.s32.totalorder %s23, 0
        %s522 = scalar_select %p521, %s23, 0
        %s523 = smul.addr %s520, 5
        %s524 = sadd.s32 %s522, %s523
        %s525 = smul.addr %s524, 8
        %s526 = scalar_lea.vmem %s5, %s525
      $region52: #{shell_forward.1} parent=47 // pred_fallthru
        _
    $region48: #{shell_forward.1} parent=5 // pred_fallthru
      _
  $region6: #{shell_forward.1} parent=0 // loop_footer
    %s15 = sadd.s32 1, %s11
  $region7: #{shell_forward.1} parent=0 // loop_footer_branch
    %10 = sbr.rel target = $region3
  $region8: #{shell_forward.1} parent=0 // loop_exit
    _

</llo_original>
